<compile_context>
chip_gen: v6e
topology: v6e:2x2x1
jax: 0.10.0
libtpu: 0.0.40
codegen_flags: <defaults>
</compile_context>

<pallas_src>
import jax
import jax.numpy as jnp
from jax.experimental import pallas as pl
from jax.experimental.pallas import tpu as pltpu

_LANE = 128
_SUBLANE = 8
_MIB = 1024 * 1024


def _round_up(x, m):
    return ((x + m - 1) // m) * m


def _vmem_capacity_bytes():
    """Best-effort VMEM capacity query; conservative 64 MiB default (safe everywhere)."""
    try:
        info = pltpu.get_tpu_info()
        for name in ("vmem_capacity_bytes", "vmem_size_bytes", "vmem_bytes"):
            v = getattr(info, name, None)
            if v:
                return int(v)
    except Exception:
        pass
    return 64 * _MIB


def _crossnet_kernel(base_ref, cross_ref, wt_ref, b_ref, out_ref):
    cross = cross_ref[...]
    # Linear: cross @ W^T.  Wt is pre-transposed in the wrapper, so this is a
    # plain MXU matmul with f32 accumulation (no per-step RHS relayout).
    lin = jnp.dot(cross, wt_ref[...], preferred_element_type=jnp.float32)
    lin = lin + b_ref[...].astype(jnp.float32)          # (1, Hp) broadcast
    # Cross interaction: base * lin + cross  (VPU elementwise, f32 math).
    out = base_ref[...].astype(jnp.float32) * lin + cross.astype(jnp.float32)
    out_ref[...] = out.astype(out_ref.dtype)


def _choose_batch_tile(B, Hp, stream_itemsize, out_itemsize, *,
                       budget_bytes, weight_buffers, tb_cap, min_grid_steps):
    """Largest multiple-of-8 batch tile whose full VMEM footprint fits the budget.

    Accounts for:
      * resident weight (weight_buffers x Hp x Hp) and bias,
      * double-buffered streamed base/cross (stream dtype) and out (out dtype),
      * ~2 f32 row-sized intermediates (lin and the f32 out temporary).
    """
    weight_bytes = weight_buffers * Hp * Hp * stream_itemsize
    bias_bytes = 2 * Hp * 4
    per_row = Hp * (2 * 2 * stream_itemsize + 2 * out_itemsize + 2 * 4)
    avail = budget_bytes - weight_bytes - bias_bytes
    tb = max(avail // per_row, _SUBLANE)

    # MXU-friendly rounding.
    if tb >= 256:
        tb = (tb // 256) * 256
    elif tb >= 128:
        tb = 128
    else:
        tb = max(_SUBLANE, (tb // _SUBLANE) * _SUBLANE)
    tb = min(tb, tb_cap)

    # Guarantee enough grid steps to feed both TensorCores on v7x-class parts.
    if min_grid_steps > 1 and B > min_grid_steps * _SUBLANE:
        cap_for_steps = _round_up(-(-B // min_grid_steps), _SUBLANE)
        tb = min(tb, max(_SUBLANE, cap_for_steps))

    tb = min(tb, _round_up(B, _SUBLANE))
    tb = max(_SUBLANE, (tb // _SUBLANE) * _SUBLANE)
    return int(tb)


def _build_call(B, Hp, TB, out_dtype, aliases, vmem_limit, cost,
                single_buffer_resident):
    if single_buffer_resident:
        w_spec = pl.BlockSpec((Hp, Hp), lambda i: (0, 0),
                              pipeline_mode=pl.Buffered(1))
        b_spec = pl.BlockSpec((1, Hp), lambda i: (0, 0),
                              pipeline_mode=pl.Buffered(1))
    else:
        w_spec = pl.BlockSpec((Hp, Hp), lambda i: (0, 0))
        b_spec = pl.BlockSpec((1, Hp), lambda i: (0, 0))

    return pl.pallas_call(
        _crossnet_kernel,
        out_shape=jax.ShapeDtypeStruct((B, Hp), out_dtype),
        grid_spec=pl.GridSpec(
            grid=(pl.cdiv(B, TB),),
            in_specs=[
                pl.BlockSpec((TB, Hp), lambda i: (i, 0)),   # base   (streamed)
                pl.BlockSpec((TB, Hp), lambda i: (i, 0)),   # cross  (streamed)
                w_spec,                                     # weight (VMEM-resident)
                b_spec,                                     # bias   (VMEM-resident)
            ],
            out_specs=pl.BlockSpec((TB, Hp), lambda i: (i, 0)),
        ),
        input_output_aliases=aliases,
        compiler_params=pltpu.CompilerParams(
            dimension_semantics=("parallel",),   # megacore sharding on v7x
            vmem_limit_bytes=vmem_limit,
        ),
        cost_estimate=cost,
    )


def crossnet_forward(base, cross, weight, bias, *, compute_dtype=None):
    """base, cross: (B, H); weight: (H, H) in PyTorch (out, in) convention; bias: (H,)."""
    B, H = base.shape
    out_dtype = base.dtype
    orig_dtype = base.dtype

    # Optional reduced-precision streaming (e.g. jnp.bfloat16): halves HBM traffic
    # for base/cross/weight; matmul still accumulates in f32 and elementwise math
    # is done in f32 (residual `+ cross` uses the bf16-rounded cross -> looser tol).
    if compute_dtype is not None:
        base = base.astype(compute_dtype)
        cross = cross.astype(compute_dtype)
        weight = weight.astype(compute_dtype)

    stream_itemsize = jnp.dtype(base.dtype).itemsize
    out_itemsize = jnp.dtype(out_dtype).itemsize

    Hp = _round_up(H, _LANE)                      # lane-dense hidden dim
    pad_h = Hp != H

    # One wrapper-side transpose (folded into the pad) so the kernel contracts
    # over the weight's input dim without any per-step relayout.
    weight_t = weight.T                           # (in, out)
    if pad_h:
        # Zero padding keeps results exact: padded weight rows/cols and bias
        # entries are zero, so padded output columns are zero and dropped.
        base = jnp.pad(base, ((0, 0), (0, Hp - H)))
        cross = jnp.pad(cross, ((0, 0), (0, Hp - H)))
        weight_t = jnp.pad(weight_t, ((0, Hp - H), (0, Hp - H)))
        bias = jnp.pad(bias, (0, Hp - H))
    b2d = bias.reshape(1, Hp).astype(jnp.float32)

    # Per-generation VMEM budgets (v7x-class: 64 MiB/TC; v5e/v6e: 128 MiB).
    vmem_cap = _vmem_capacity_bytes()
    if vmem_cap <= 96 * _MIB:
        budget_bytes, vmem_limit = 28 * _MIB, 48 * _MIB
        tb_cap, min_grid_steps = 1024, 4
    else:
        budget_bytes, vmem_limit = 88 * _MIB, 100 * _MIB
        tb_cap, min_grid_steps = 4096, 1

    TB = _choose_batch_tile(B, Hp, stream_itemsize, out_itemsize,
                            budget_bytes=budget_bytes, weight_buffers=1,
                            tb_cap=tb_cap, min_grid_steps=min_grid_steps)

    # Alias the private padded/cast copy of `cross` to the output when dtypes
    # match (saves one HBM allocation); never donate the caller's array.
    cross_is_private_copy = pad_h or (
        compute_dtype is not None and jnp.dtype(compute_dtype) != orig_dtype)
    aliases = {1: 0} if (cross_is_private_copy and cross.dtype == out_dtype) else {}

    cost = pl.CostEstimate(
        flops=int(2 * B * Hp * Hp + 3 * B * Hp),
        transcendentals=0,
        bytes_accessed=int((2 * B * Hp + Hp * Hp) * stream_itemsize
                           + B * Hp * out_itemsize + Hp * 4),
    )

    try:
        out = _build_call(B, Hp, TB, out_dtype, aliases, vmem_limit, cost,
                          single_buffer_resident=True)(base, cross, weight_t, b2d)
    except Exception:
        # Fallback for JAX versions without BlockSpec(pipeline_mode=...) support.
        out = _build_call(B, Hp, TB, out_dtype, aliases, vmem_limit, cost,
                          single_buffer_resident=False)(base, cross, weight_t, b2d)

    if pad_h:
        out = out[:, :H]
    return out


def crossnet_reference(base, cross, weight, bias):
    return base * (cross @ weight.T + bias) + cross


if __name__ == "__main__":
    key = jax.random.PRNGKey(0)
    k_base, k_cross, k_w, k_b = jax.random.split(key, 4)

    batch, hidden = 8, 32

    base = jax.random.normal(k_base, (batch, hidden), dtype=jnp.float32)
    cross = jax.random.normal(k_cross, (batch, hidden), dtype=jnp.float32)

    # Deterministic parameter init mirroring the PyTorch module:
    #   weight ~ Normal(mean=0, std=0.01)          (nn.init.normal)
    #   bias   ~ Uniform(-1/sqrt(H), 1/sqrt(H))    (nn.Linear default)
    weight = 0.01 * jax.random.normal(k_w, (hidden, hidden), dtype=jnp.float32)
    bound = 1.0 / float(hidden ** 0.5)
    bias = jax.random.uniform(k_b, (hidden,), minval=-bound, maxval=bound,
                              dtype=jnp.float32)

    ref = crossnet_reference(base, cross, weight, bias)

    # f32 path (exact vs reference).
    out = jax.block_until_ready(crossnet_forward(base, cross, weight, bias))
    assert out.shape == (batch, hidden)
    assert jnp.allclose(out, ref, atol=1e-5, rtol=1e-5), "f32 mismatch vs reference"

    # bf16-streaming path (halves HBM traffic; MXU-native bf16; looser tolerance
    # because the residual `+ cross` sees the bf16-rounded cross).
    out_bf16 = jax.block_until_ready(
        crossnet_forward(base, cross, weight, bias, compute_dtype=jnp.bfloat16))
    assert out_bf16.shape == (batch, hidden)
    assert jnp.allclose(out_bf16, ref, atol=5e-2, rtol=5e-2), "bf16 mismatch vs reference"

    print("KERNEL_OK")
</pallas_src>

<mosaic_0001>
module attributes {stable_mosaic.version = 11 : i64} {
  func.func @_crossnet_kernel(%arg0: i32, %arg1: memref<8x128xf32, #tpu.memory_space<vmem>>, %arg2: memref<8x128xf32, #tpu.memory_space<vmem>>, %arg3: memref<128x128xf32, #tpu.memory_space<vmem>>, %arg4: memref<1x128xf32, #tpu.memory_space<vmem>>, %arg5: memref<8x128xf32, #tpu.memory_space<vmem>>) attributes {dimension_semantics = [#tpu.dimension_semantics<parallel>], iteration_bounds = array<i64: 1>, scalar_prefetch = 0 : i64, scratch_operands = 0 : i64, tpu.core_type = #tpu.core_type<tc>, window_params = [{transform_indices = @transform_0, window_bounds = array<i64: 8, 128>}, {transform_indices = @transform_1, window_bounds = array<i64: 8, 128>}, {pipeline_mode = #tpu.pipeline_mode<synchronous>, transform_indices = @transform_2, window_bounds = array<i64: 128, 128>}, {pipeline_mode = #tpu.pipeline_mode<synchronous>, transform_indices = @transform_3, window_bounds = array<i64: 1, 128>}, {transform_indices = @transform_4, window_bounds = array<i64: 8, 128>}]} {
    %c0 = arith.constant 0 : index
    %c0_0 = arith.constant 0 : index
    %0 = vector.load %arg2[%c0, %c0_0] : memref<8x128xf32, #tpu.memory_space<vmem>>, vector<8x128xf32>
    %c0_1 = arith.constant 0 : index
    %c0_2 = arith.constant 0 : index
    %1 = vector.load %arg3[%c0_1, %c0_2] : memref<128x128xf32, #tpu.memory_space<vmem>>, vector<128x128xf32>
    %cst = arith.constant dense<0.000000e+00> : vector<8x128xf32>
    %2 = tpu.matmul %0, %1, %cst {dimension_numbers = #tpu.dot_dimension_numbers<[1], [0], [0], [1], [0, 0, 1, 1], [], []>} : vector<8x128xf32>, vector<128x128xf32>, vector<8x128xf32> -> vector<8x128xf32>
    %c0_3 = arith.constant 0 : index
    %c0_4 = arith.constant 0 : index
    %3 = vector.load %arg4[%c0_3, %c0_4] : memref<1x128xf32, #tpu.memory_space<vmem>>, vector<1x128xf32>
    %4 = vector.broadcast %3 : vector<1x128xf32> to vector<8x128xf32>
    %5 = arith.addf %2, %4 : vector<8x128xf32>
    %c0_5 = arith.constant 0 : index
    %c0_6 = arith.constant 0 : index
    %6 = vector.load %arg1[%c0_5, %c0_6] : memref<8x128xf32, #tpu.memory_space<vmem>>, vector<8x128xf32>
    %7 = arith.mulf %6, %5 : vector<8x128xf32>
    %8 = arith.addf %7, %0 : vector<8x128xf32>
    %c0_7 = arith.constant 0 : index
    %c0_8 = arith.constant 0 : index
    %9 = vector.load %arg5[%c0_7, %c0_8] : memref<8x128xf32, #tpu.memory_space<vmem>>, vector<8x128xf32>
    tpu.vector_store %arg5[%c0_7, %c0_8], %8 {strides = array<i32>} : memref<8x128xf32, #tpu.memory_space<vmem>>, vector<8x128xf32>,
    return
  }
  func.func @transform_0(%arg0: i32) -> (i32, i32) {
    %c0_i32 = arith.constant 0 : i32
    %c0_i32_0 = arith.constant 0 : i32
    return %arg0, %c0_i32 : i32, i32
  }
  func.func @transform_1(%arg0: i32) -> (i32, i32) {
    %c0_i32 = arith.constant 0 : i32
    %c0_i32_0 = arith.constant 0 : i32
    return %arg0, %c0_i32 : i32, i32
  }
  func.func @transform_2(%arg0: i32) -> (i32, i32) {
    %c0_i32 = arith.constant 0 : i32
    %c0_i32_0 = arith.constant 0 : i32
    %c0_i32_1 = arith.constant 0 : i32
    return %c0_i32, %c0_i32_0 : i32, i32
  }
  func.func @transform_3(%arg0: i32) -> (i32, i32) {
    %c0_i32 = arith.constant 0 : i32
    %c0_i32_0 = arith.constant 0 : i32
    %c0_i32_1 = arith.constant 0 : i32
    return %c0_i32, %c0_i32_0 : i32, i32
  }
  func.func @transform_4(%arg0: i32) -> (i32, i32) {
    %c0_i32 = arith.constant 0 : i32
    %c0_i32_0 = arith.constant 0 : i32
    return %arg0, %c0_i32 : i32, i32
  }
}

module attributes {stable_mosaic.version = 11 : i64} {
  func.func @_crossnet_kernel(%arg0: i32, %arg1: memref<8x128xf32, #tpu.memory_space<vmem>>, %arg2: memref<8x128xf32, #tpu.memory_space<vmem>>, %arg3: memref<128x128xf32, #tpu.memory_space<vmem>>, %arg4: memref<1x128xf32, #tpu.memory_space<vmem>>, %arg5: memref<8x128xf32, #tpu.memory_space<vmem>>) attributes {dimension_semantics = [#tpu.dimension_semantics<parallel>], iteration_bounds = array<i64: 1>, scalar_prefetch = 0 : i64, scratch_operands = 0 : i64, tpu.core_type = #tpu.core_type<tc>, window_params = [{transform_indices = @transform_0, window_bounds = array<i64: 8, 128>}, {transform_indices = @transform_1, window_bounds = array<i64: 8, 128>}, {pipeline_mode = #tpu.pipeline_mode<synchronous>, transform_indices = @transform_2, window_bounds = array<i64: 128, 128>}, {pipeline_mode = #tpu.pipeline_mode<synchronous>, transform_indices = @transform_3, window_bounds = array<i64: 1, 128>}, {transform_indices = @transform_4, window_bounds = array<i64: 8, 128>}]} {
    %c0 = arith.constant 0 : index
    %c0_0 = arith.constant 0 : index
    %0 = vector.load %arg2[%c0, %c0_0] : memref<8x128xf32, #tpu.memory_space<vmem>>, vector<8x128xf32>
    %c0_1 = arith.constant 0 : index
    %c0_2 = arith.constant 0 : index
    %1 = vector.load %arg3[%c0_1, %c0_2] : memref<128x128xf32, #tpu.memory_space<vmem>>, vector<128x128xf32>
    %cst = arith.constant dense<0.000000e+00> : vector<8x128xf32>
    %2 = tpu.matmul %0, %1, %cst {dimension_numbers = #tpu.dot_dimension_numbers<[1], [0], [0], [1], [0, 0, 1, 1], [], []>} : vector<8x128xf32>, vector<128x128xf32>, vector<8x128xf32> -> vector<8x128xf32>
    %c0_3 = arith.constant 0 : index
    %c0_4 = arith.constant 0 : index
    %3 = vector.load %arg4[%c0_3, %c0_4] : memref<1x128xf32, #tpu.memory_space<vmem>>, vector<1x128xf32>
    %4 = vector.broadcast %3 : vector<1x128xf32> to vector<8x128xf32>
    %5 = arith.addf %2, %4 : vector<8x128xf32>
    %c0_5 = arith.constant 0 : index
    %c0_6 = arith.constant 0 : index
    %6 = vector.load %arg1[%c0_5, %c0_6] : memref<8x128xf32, #tpu.memory_space<vmem>>, vector<8x128xf32>
    %7 = arith.mulf %6, %5 : vector<8x128xf32>
    %8 = arith.addf %7, %0 : vector<8x128xf32>
    %c0_7 = arith.constant 0 : index
    %c0_8 = arith.constant 0 : index
    %9 = vector.load %arg5[%c0_7, %c0_8] : memref<8x128xf32, #tpu.memory_space<vmem>>, vector<8x128xf32>
    tpu.vector_store %arg5[%c0_7, %c0_8], %8 {strides = array<i32>} : memref<8x128xf32, #tpu.memory_space<vmem>>, vector<8x128xf32>,
    return
  }
  func.func @transform_0(%arg0: i32) -> (i32, i32) {
    %c0_i32 = arith.constant 0 : i32
    %c0_i32_0 = arith.constant 0 : i32
    return %arg0, %c0_i32 : i32, i32
  }
  func.func @transform_1(%arg0: i32) -> (i32, i32) {
    %c0_i32 = arith.constant 0 : i32
    %c0_i32_0 = arith.constant 0 : i32
    return %arg0, %c0_i32 : i32, i32
  }
  func.func @transform_2(%arg0: i32) -> (i32, i32) {
    %c0_i32 = arith.constant 0 : i32
    %c0_i32_0 = arith.constant 0 : i32
    %c0_i32_1 = arith.constant 0 : i32
    return %c0_i32, %c0_i32_0 : i32, i32
  }
  func.func @transform_3(%arg0: i32) -> (i32, i32) {
    %c0_i32 = arith.constant 0 : i32
    %c0_i32_0 = arith.constant 0 : i32
    %c0_i32_1 = arith.constant 0 : i32
    return %c0_i32, %c0_i32_0 : i32, i32
  }
  func.func @transform_4(%arg0: i32) -> (i32, i32) {
    %c0_i32 = arith.constant 0 : i32
    %c0_i32_0 = arith.constant 0 : i32
    return %arg0, %c0_i32 : i32, i32
  }
}

</mosaic_0001>

<llo_original>
// kernel: tpu_custom_call.1
$region0: #{tpu_custom_call.1}
  #allocation0 [shape = 'u32[]', space=smem, size = 0x4, offset = 0x4, fixed_abs, tag = 'smem constant byte address 0x4 - core index']
  #allocation1 [shape = 'u32[144,128]{1,0:T(1,128)}', space=vmem, size = 0x12000, scoped, tag = 'internal scratch']
  %s0 = inlined_call_operand.vmem [shape: f32[8,128], index: 0, kind: input, shape index: {}]
  %s1 = inlined_call_operand.hbm [shape: f32[8,128], index: 1, kind: input, shape index: {}, may-alias: {1,4}]
  %s2 = inlined_call_operand.hbm [shape: f32[128,128], index: 2, kind: input, shape index: {}]
  %s3 = inlined_call_operand.vmem [shape: f32[1,128], index: 3, kind: input, shape index: {}]
  %s4 = inlined_call_operand.hbm [shape: f32[8,128], index: 4, kind: output, shape index: {}, may-alias: {1,4}]
  %s5 = sld [smem:[#allocation0]]
  $region34: #{tpu_custom_call.1} parent=0
    _
  %s7 = ssub.s32 1, %s5
  %s8 = scalar_select 0, %s7, %s5
  $region1: #{tpu_custom_call.1} parent=0
    #allocation2 [shape = 'u8[4096]{0}', space=vmem, size = 0x1000, scoped, tag = 'input window, operand 1, single buffered']
    #allocation3 [shape = 's32[1]{0}', space=sflag, size = 0x4, scoped, tag = 'scoped memory for tpu_custom_call.1']
    #allocation4 [shape = 's32[1]{0}', space=sflag, size = 0x4, scoped, tag = 'scoped memory for tpu_custom_call.1']
    #allocation5 [shape = 'u8[65536]{0}', space=vmem, size = 0x10000, scoped, tag = 'input window, operand 2, single buffered']
    #allocation6 [shape = 's32[1]{0}', space=sflag, size = 0x4, scoped, tag = 'scoped memory for tpu_custom_call.1']
    #allocation7 [shape = 'u8[4096]{0}', space=vmem, size = 0x1000, scoped, tag = 'output window, operand 0, single buffered']
    %9 = vsyncpa [#allocation3], 0
    %10 = vsyncpa [#allocation6], 0
    %11 = vsyncpa [#allocation4], 0
    // Predicated region
    $region2: #{tpu_custom_call.1} parent=1 // pred_check
      _
    $region3: #{tpu_custom_call.1} parent=1 // pred_check_branch
      %13 = sbr.rel (0) target = $region5
    $region4: #{tpu_custom_call.1} parent=1 // pred_region
      _
    $region5: #{tpu_custom_call.1} parent=1 // pred_fallthru
      _
    // Predicated region
    $region6: #{tpu_custom_call.1} parent=1 // pred_check
      _
    $region7: #{tpu_custom_call.1} parent=1 // pred_check_branch
      %15 = sbr.rel (0) target = $region9
    $region8: #{tpu_custom_call.1} parent=1 // pred_region
      %s17 = ssub.s32 128, 128
      %18 = vsyncadd [#allocation3], %s17
      %s20 = sshll.u32 [#allocation2], 4
      %s21 = int_to_ptr.vmem [resolvable:$true] %s20
      %23 = dma.hbm_to_vmem [thread:$0]  %s1, 128, %s21, [#allocation3]
    $region9: #{tpu_custom_call.1} parent=1 // pred_fallthru
      _
    // Predicated region
    $region10: #{tpu_custom_call.1} parent=1 // pred_check
      _
    $region11: #{tpu_custom_call.1} parent=1 // pred_check_branch
      %25 = sbr.rel (0) target = $region13
    $region12: #{tpu_custom_call.1} parent=1 // pred_region
      %s27 = ssub.s32 2048, 2048
      %28 = vsyncadd [#allocation6], %s27
      %s29 = sshll.u32 [#allocation5], 4
      %s30 = int_to_ptr.vmem [resolvable:$true] %s29
      %35 = dma.hbm_to_vmem [thread:$0]  %s2, 2048, %s30, [#allocation6], 128, 128, 8
    $region13: #{tpu_custom_call.1} parent=1 // pred_fallthru
      _
    // Predicated region
    $region14: #{tpu_custom_call.1} parent=1 // pred_check
      _
    $region15: #{tpu_custom_call.1} parent=1 // pred_check_branch
      %37 = sbr.rel (0) target = $region17
    $region16: #{tpu_custom_call.1} parent=1 // pred_region
      _
    $region17: #{tpu_custom_call.1} parent=1 // pred_fallthru
      _
    // Predicated region
    $region18: #{tpu_custom_call.1} parent=1 // pred_check
      _
    $region19: #{tpu_custom_call.1} parent=1 // pred_check_branch
      %39 = sbr.rel (0) target = $region21
    $region20: #{tpu_custom_call.1} parent=1 // pred_region
      %40 = dma.done [#allocation3], 128
    $region21: #{tpu_custom_call.1} parent=1 // pred_fallthru
      _
    // Predicated region
    $region22: #{tpu_custom_call.1} parent=1 // pred_check
      _
    $region23: #{tpu_custom_call.1} parent=1 // pred_check_branch
      %42 = sbr.rel (0) target = $region25
    $region24: #{tpu_custom_call.1} parent=1 // pred_region
      %43 = dma.done [#allocation6], 2048
    $region25: #{tpu_custom_call.1} parent=1 // pred_fallthru
      _
    %v44 = vld [vmem:[#allocation2] sm:$0xff]
    %v45 = vld [vmem:[#allocation5] sm:$0xff]
    %v46 = vld [vmem:[#allocation5 + $0x8] sm:$0xff]
    %v47 = vld [vmem:[#allocation5 + $0x10] sm:$0xff]
    %v48 = vld [vmem:[#allocation5 + $0x18] sm:$0xff]
    %v49 = vld [vmem:[#allocation5 + $0x20] sm:$0xff]
    %v50 = vld [vmem:[#allocation5 + $0x28] sm:$0xff]
    %v51 = vld [vmem:[#allocation5 + $0x30] sm:$0xff]
    %v52 = vld [vmem:[#allocation5 + $0x38] sm:$0xff]
    %v53 = vld [vmem:[#allocation5 + $0x40] sm:$0xff]
    %v54 = vld [vmem:[#allocation5 + $0x48] sm:$0xff]
    %v55 = vld [vmem:[#allocation5 + $0x50] sm:$0xff]
    %v56 = vld [vmem:[#allocation5 + $0x58] sm:$0xff]
    %v57 = vld [vmem:[#allocation5 + $0x60] sm:$0xff]
    %v58 = vld [vmem:[#allocation5 + $0x68] sm:$0xff]
    %v59 = vld [vmem:[#allocation5 + $0x70] sm:$0xff]
    %v60 = vld [vmem:[#allocation5 + $0x78] sm:$0xff]
    %v61 = vld [vmem:[%s3] sm:$0x1]
    %v63 = vlaneseq
    %v64 = vshrl.u32 %v63, 7
    %v65 = vsub.s32 0, %v64
    %v66 = vrot.slane %v61, %v65
    %68 = vmatprep.subr.mxu0 0.0
    %69 = vmatpush1.msra.mxu0 %v60
    %70 = vmatprep.subr.mxu0 0.0
    %71 = vmatpush1.msra.mxu0 %v59
    %72 = vmatprep.subr.mxu0 0.0
    %73 = vmatpush1.msra.mxu0 %v58
    %74 = vmatprep.subr.mxu0 0.0
    %75 = vmatpush1.msra.mxu0 %v57
    %76 = vmatprep.subr.mxu0 0.0
    %77 = vmatpush1.msra.mxu0 %v56
    %78 = vmatprep.subr.mxu0 0.0
    %79 = vmatpush1.msra.mxu0 %v55
    %80 = vmatprep.subr.mxu0 0.0
    %81 = vmatpush1.msra.mxu0 %v54
    %82 = vmatprep.subr.mxu0 0.0
    %83 = vmatpush1.msra.mxu0 %v53
    %84 = vmatprep.subr.mxu0 0.0
    %85 = vmatpush1.msra.mxu0 %v52
    %86 = vmatprep.subr.mxu0 0.0
    %87 = vmatpush1.msra.mxu0 %v51
    %88 = vmatprep.subr.mxu0 0.0
    %89 = vmatpush1.msra.mxu0 %v50
    %90 = vmatprep.subr.mxu0 0.0
    %91 = vmatpush1.msra.mxu0 %v49
    %92 = vmatprep.subr.mxu0 0.0
    %93 = vmatpush1.msra.mxu0 %v48
    %94 = vmatprep.subr.mxu0 0.0
    %95 = vmatpush1.msra.mxu0 %v47
    %96 = vmatprep.subr.mxu0 0.0
    %97 = vmatpush1.msra.mxu0 %v46
    %98 = vmatprep.subr.mxu0 0.0
    %99 = vmatpush1.msra.mxu0 %v45
    %100 = vmatprep.subr.mxu0 0.0
    %101 = vmatpush2.msra.mxu0 0.0
    %102 = vmatprep.subr.mxu0 0.0
    %103 = vmatpush2.msra.mxu0 0.0
    %104 = vmatprep.subr.mxu0 0.0
    %105 = vmatpush2.msra.mxu0 0.0
    %106 = vmatprep.subr.mxu0 0.0
    %107 = vmatpush2.msra.mxu0 0.0
    %108 = vmatprep.subr.mxu0 0.0
    %109 = vmatpush2.msra.mxu0 0.0
    %110 = vmatprep.subr.mxu0 0.0
    %111 = vmatpush2.msra.mxu0 0.0
    %112 = vmatprep.subr.mxu0 0.0
    %113 = vmatpush2.msra.mxu0 0.0
    %114 = vmatprep.subr.mxu0 0.0
    %115 = vmatpush2.msra.mxu0 0.0
    %116 = vmatprep.subr.mxu0 0.0
    %117 = vmatpush2.msra.mxu0 0.0
    %118 = vmatprep.subr.mxu0 0.0
    %119 = vmatpush2.msra.mxu0 0.0
    %120 = vmatprep.subr.mxu0 0.0
    %121 = vmatpush2.msra.mxu0 0.0
    %122 = vmatprep.subr.mxu0 0.0
    %123 = vmatpush2.msra.mxu0 0.0
    %124 = vmatprep.subr.mxu0 0.0
    %125 = vmatpush2.msra.mxu0 0.0
    %126 = vmatprep.subr.mxu0 0.0
    %127 = vmatpush2.msra.mxu0 0.0
    %128 = vmatprep.subr.mxu0 0.0
    %129 = vmatpush2.msra.mxu0 0.0
    %130 = vmatprep.subr.mxu0 0.0
    %131 = vmatpush2.msra.mxu0 0.0
    %132 = vmatprep.mubr.f32.mxu0 0.0
    %133 = vmatmul.mubr.f32.gmra.mxu0 %v44
    %v134 = vpop.f32.mrf.mxu0
    %v135 = vadd.f32 %v66, %v134
    %v136 = vpop.f32.mrf.mxu0
    %137 = vdwg.mxu0
    %v138 = vld [vmem:[%s0] sm:$0xff]
    %v139 = vmul.f32 %v138, %v135
    %v140 = vadd.f32 %v139, %v44
    %141 = vst [vmem:[#allocation7] sm:$0xff] %v140
    // Predicated region
    $region26: #{tpu_custom_call.1} parent=1 // pred_check
      _
    $region27: #{tpu_custom_call.1} parent=1 // pred_check_branch
      %143 = sbr.rel (0) target = $region29
    $region28: #{tpu_custom_call.1} parent=1 // pred_region
      %s145 = ssub.s32 128, 128
      %146 = vsyncadd [#allocation4], %s145
      %s148 = sshll.u32 [#allocation7], 4
      %s149 = int_to_ptr.vmem [resolvable:$true] %s148
      %151 = dma.vmem_to_hbm [thread:$0]  %s149, 128, %s4, [#allocation4]
    $region29: #{tpu_custom_call.1} parent=1 // pred_fallthru
      _
    // Predicated region
    $region30: #{tpu_custom_call.1} parent=1 // pred_check
      _
    $region31: #{tpu_custom_call.1} parent=1 // pred_check_branch
      %153 = sbr.rel (0) target = $region33
    $region32: #{tpu_custom_call.1} parent=1 // pred_region
      %154 = dma.done [#allocation4], 128
    $region33: #{tpu_custom_call.1} parent=1 // pred_fallthru
      _
    %155 = vsyncpa [#allocation3], 1
    %156 = vsyncpa [#allocation6], 1
    %157 = vsyncpa [#allocation4], 1

// kernel: tpu_custom_call.1
$region0: #{tpu_custom_call.1}
  #allocation0 [shape = 'u32[]', space=smem, size = 0x4, offset = 0x4, fixed_abs, tag = 'smem constant byte address 0x4 - core index']
  #allocation1 [shape = 'u32[144,128]{1,0:T(1,128)}', space=vmem, size = 0x12000, scoped, tag = 'internal scratch']
  %s0 = inlined_call_operand.vmem [shape: f32[8,128], index: 0, kind: input, shape index: {}]
  %s1 = inlined_call_operand.hbm [shape: f32[8,128], index: 1, kind: input, shape index: {}, may-alias: {1,4}]
  %s2 = inlined_call_operand.hbm [shape: f32[128,128], index: 2, kind: input, shape index: {}]
  %s3 = inlined_call_operand.vmem [shape: f32[1,128], index: 3, kind: input, shape index: {}]
  %s4 = inlined_call_operand.hbm [shape: f32[8,128], index: 4, kind: output, shape index: {}, may-alias: {1,4}]
  %s5 = sld [smem:[#allocation0]]
  $region34: #{tpu_custom_call.1} parent=0
    _
  %s7 = ssub.s32 1, %s5
  %s8 = scalar_select 0, %s7, %s5
  $region1: #{tpu_custom_call.1} parent=0
    #allocation2 [shape = 'u8[4096]{0}', space=vmem, size = 0x1000, scoped, tag = 'input window, operand 1, single buffered']
    #allocation3 [shape = 's32[1]{0}', space=sflag, size = 0x4, scoped, tag = 'scoped memory for tpu_custom_call.1']
    #allocation4 [shape = 's32[1]{0}', space=sflag, size = 0x4, scoped, tag = 'scoped memory for tpu_custom_call.1']
    #allocation5 [shape = 'u8[65536]{0}', space=vmem, size = 0x10000, scoped, tag = 'input window, operand 2, single buffered']
    #allocation6 [shape = 's32[1]{0}', space=sflag, size = 0x4, scoped, tag = 'scoped memory for tpu_custom_call.1']
    #allocation7 [shape = 'u8[4096]{0}', space=vmem, size = 0x1000, scoped, tag = 'output window, operand 0, single buffered']
    %9 = vsyncpa [#allocation3], 0
    %10 = vsyncpa [#allocation6], 0
    %11 = vsyncpa [#allocation4], 0
    // Predicated region
    $region2: #{tpu_custom_call.1} parent=1 // pred_check
      _
    $region3: #{tpu_custom_call.1} parent=1 // pred_check_branch
      %13 = sbr.rel (0) target = $region5
    $region4: #{tpu_custom_call.1} parent=1 // pred_region
      _
    $region5: #{tpu_custom_call.1} parent=1 // pred_fallthru
      _
    // Predicated region
    $region6: #{tpu_custom_call.1} parent=1 // pred_check
      _
    $region7: #{tpu_custom_call.1} parent=1 // pred_check_branch
      %15 = sbr.rel (0) target = $region9
    $region8: #{tpu_custom_call.1} parent=1 // pred_region
      %s17 = ssub.s32 128, 128
      %18 = vsyncadd [#allocation3], %s17
      %s20 = sshll.u32 [#allocation2], 4
      %s21 = int_to_ptr.vmem [resolvable:$true] %s20
      %23 = dma.hbm_to_vmem [thread:$0]  %s1, 128, %s21, [#allocation3]
    $region9: #{tpu_custom_call.1} parent=1 // pred_fallthru
      _
    // Predicated region
    $region10: #{tpu_custom_call.1} parent=1 // pred_check
      _
    $region11: #{tpu_custom_call.1} parent=1 // pred_check_branch
      %25 = sbr.rel (0) target = $region13
    $region12: #{tpu_custom_call.1} parent=1 // pred_region
      %s27 = ssub.s32 2048, 2048
      %28 = vsyncadd [#allocation6], %s27
      %s29 = sshll.u32 [#allocation5], 4
      %s30 = int_to_ptr.vmem [resolvable:$true] %s29
      %35 = dma.hbm_to_vmem [thread:$0]  %s2, 2048, %s30, [#allocation6], 128, 128, 8
    $region13: #{tpu_custom_call.1} parent=1 // pred_fallthru
      _
    // Predicated region
    $region14: #{tpu_custom_call.1} parent=1 // pred_check
      _
    $region15: #{tpu_custom_call.1} parent=1 // pred_check_branch
      %37 = sbr.rel (0) target = $region17
    $region16: #{tpu_custom_call.1} parent=1 // pred_region
      _
    $region17: #{tpu_custom_call.1} parent=1 // pred_fallthru
      _
    // Predicated region
    $region18: #{tpu_custom_call.1} parent=1 // pred_check
      _
    $region19: #{tpu_custom_call.1} parent=1 // pred_check_branch
      %39 = sbr.rel (0) target = $region21
    $region20: #{tpu_custom_call.1} parent=1 // pred_region
      %40 = dma.done [#allocation3], 128
    $region21: #{tpu_custom_call.1} parent=1 // pred_fallthru
      _
    // Predicated region
    $region22: #{tpu_custom_call.1} parent=1 // pred_check
      _
    $region23: #{tpu_custom_call.1} parent=1 // pred_check_branch
      %42 = sbr.rel (0) target = $region25
    $region24: #{tpu_custom_call.1} parent=1 // pred_region
      %43 = dma.done [#allocation6], 2048
    $region25: #{tpu_custom_call.1} parent=1 // pred_fallthru
      _
    %v44 = vld [vmem:[#allocation2] sm:$0xff]
    %v45 = vld [vmem:[#allocation5] sm:$0xff]
    %v46 = vld [vmem:[#allocation5 + $0x8] sm:$0xff]
    %v47 = vld [vmem:[#allocation5 + $0x10] sm:$0xff]
    %v48 = vld [vmem:[#allocation5 + $0x18] sm:$0xff]
    %v49 = vld [vmem:[#allocation5 + $0x20] sm:$0xff]
    %v50 = vld [vmem:[#allocation5 + $0x28] sm:$0xff]
    %v51 = vld [vmem:[#allocation5 + $0x30] sm:$0xff]
    %v52 = vld [vmem:[#allocation5 + $0x38] sm:$0xff]
    %v53 = vld [vmem:[#allocation5 + $0x40] sm:$0xff]
    %v54 = vld [vmem:[#allocation5 + $0x48] sm:$0xff]
    %v55 = vld [vmem:[#allocation5 + $0x50] sm:$0xff]
    %v56 = vld [vmem:[#allocation5 + $0x58] sm:$0xff]
    %v57 = vld [vmem:[#allocation5 + $0x60] sm:$0xff]
    %v58 = vld [vmem:[#allocation5 + $0x68] sm:$0xff]
    %v59 = vld [vmem:[#allocation5 + $0x70] sm:$0xff]
    %v60 = vld [vmem:[#allocation5 + $0x78] sm:$0xff]
    %v61 = vld [vmem:[%s3] sm:$0x1]
    %v63 = vlaneseq
    %v64 = vshrl.u32 %v63, 7
    %v65 = vsub.s32 0, %v64
    %v66 = vrot.slane %v61, %v65
    %68 = vmatprep.subr.mxu0 0.0
    %69 = vmatpush1.msra.mxu0 %v60
    %70 = vmatprep.subr.mxu0 0.0
    %71 = vmatpush1.msra.mxu0 %v59
    %72 = vmatprep.subr.mxu0 0.0
    %73 = vmatpush1.msra.mxu0 %v58
    %74 = vmatprep.subr.mxu0 0.0
    %75 = vmatpush1.msra.mxu0 %v57
    %76 = vmatprep.subr.mxu0 0.0
    %77 = vmatpush1.msra.mxu0 %v56
    %78 = vmatprep.subr.mxu0 0.0
    %79 = vmatpush1.msra.mxu0 %v55
    %80 = vmatprep.subr.mxu0 0.0
    %81 = vmatpush1.msra.mxu0 %v54
    %82 = vmatprep.subr.mxu0 0.0
    %83 = vmatpush1.msra.mxu0 %v53
    %84 = vmatprep.subr.mxu0 0.0
    %85 = vmatpush1.msra.mxu0 %v52
    %86 = vmatprep.subr.mxu0 0.0
    %87 = vmatpush1.msra.mxu0 %v51
    %88 = vmatprep.subr.mxu0 0.0
    %89 = vmatpush1.msra.mxu0 %v50
    %90 = vmatprep.subr.mxu0 0.0
    %91 = vmatpush1.msra.mxu0 %v49
    %92 = vmatprep.subr.mxu0 0.0
    %93 = vmatpush1.msra.mxu0 %v48
    %94 = vmatprep.subr.mxu0 0.0
    %95 = vmatpush1.msra.mxu0 %v47
    %96 = vmatprep.subr.mxu0 0.0
    %97 = vmatpush1.msra.mxu0 %v46
    %98 = vmatprep.subr.mxu0 0.0
    %99 = vmatpush1.msra.mxu0 %v45
    %100 = vmatprep.subr.mxu0 0.0
    %101 = vmatpush2.msra.mxu0 0.0
    %102 = vmatprep.subr.mxu0 0.0
    %103 = vmatpush2.msra.mxu0 0.0
    %104 = vmatprep.subr.mxu0 0.0
    %105 = vmatpush2.msra.mxu0 0.0
    %106 = vmatprep.subr.mxu0 0.0
    %107 = vmatpush2.msra.mxu0 0.0
    %108 = vmatprep.subr.mxu0 0.0
    %109 = vmatpush2.msra.mxu0 0.0
    %110 = vmatprep.subr.mxu0 0.0
    %111 = vmatpush2.msra.mxu0 0.0
    %112 = vmatprep.subr.mxu0 0.0
    %113 = vmatpush2.msra.mxu0 0.0
    %114 = vmatprep.subr.mxu0 0.0
    %115 = vmatpush2.msra.mxu0 0.0
    %116 = vmatprep.subr.mxu0 0.0
    %117 = vmatpush2.msra.mxu0 0.0
    %118 = vmatprep.subr.mxu0 0.0
    %119 = vmatpush2.msra.mxu0 0.0
    %120 = vmatprep.subr.mxu0 0.0
    %121 = vmatpush2.msra.mxu0 0.0
    %122 = vmatprep.subr.mxu0 0.0
    %123 = vmatpush2.msra.mxu0 0.0
    %124 = vmatprep.subr.mxu0 0.0
    %125 = vmatpush2.msra.mxu0 0.0
    %126 = vmatprep.subr.mxu0 0.0
    %127 = vmatpush2.msra.mxu0 0.0
    %128 = vmatprep.subr.mxu0 0.0
    %129 = vmatpush2.msra.mxu0 0.0
    %130 = vmatprep.subr.mxu0 0.0
    %131 = vmatpush2.msra.mxu0 0.0
    %132 = vmatprep.mubr.f32.mxu0 0.0
    %133 = vmatmul.mubr.f32.gmra.mxu0 %v44
    %v134 = vpop.f32.mrf.mxu0
    %v135 = vadd.f32 %v66, %v134
    %v136 = vpop.f32.mrf.mxu0
    %137 = vdwg.mxu0
    %v138 = vld [vmem:[%s0] sm:$0xff]
    %v139 = vmul.f32 %v138, %v135
    %v140 = vadd.f32 %v139, %v44
    %141 = vst [vmem:[#allocation7] sm:$0xff] %v140
    // Predicated region
    $region26: #{tpu_custom_call.1} parent=1 // pred_check
      _
    $region27: #{tpu_custom_call.1} parent=1 // pred_check_branch
      %143 = sbr.rel (0) target = $region29
    $region28: #{tpu_custom_call.1} parent=1 // pred_region
      %s145 = ssub.s32 128, 128
      %146 = vsyncadd [#allocation4], %s145
      %s148 = sshll.u32 [#allocation7], 4
      %s149 = int_to_ptr.vmem [resolvable:$true] %s148
      %151 = dma.vmem_to_hbm [thread:$0]  %s149, 128, %s4, [#allocation4]
    $region29: #{tpu_custom_call.1} parent=1 // pred_fallthru
      _
    // Predicated region
    $region30: #{tpu_custom_call.1} parent=1 // pred_check
      _
    $region31: #{tpu_custom_call.1} parent=1 // pred_check_branch
      %153 = sbr.rel (0) target = $region33
    $region32: #{tpu_custom_call.1} parent=1 // pred_region
      %154 = dma.done [#allocation4], 128
    $region33: #{tpu_custom_call.1} parent=1 // pred_fallthru
      _
    %155 = vsyncpa [#allocation3], 1
    %156 = vsyncpa [#allocation6], 1
    %157 = vsyncpa [#allocation4], 1

</llo_original>
